<compile_context>
chip_gen: v7x
topology: tpu7x:2x2x1
jax: 0.10.0
libtpu: 0.0.40
codegen_flags: <defaults>
</compile_context>

<pallas_src>
import functools

import jax
import jax.numpy as jnp
from jax.experimental import pallas as pl
from jax.experimental.pallas import tpu as pltpu


# --------------------------- hardware / tiling helpers ---------------------- #
def _vmem_limit_bytes():
    """Generation-aware VMEM budget: ~8 MiB headroom below physical on v7x
    (64 MiB), capped at 100 MiB on v5e/v6e (128 MiB)."""
    try:
        cap = pltpu.get_tpu_info().vmem_capacity_bytes
    except Exception:
        cap = 64 << 20  # conservative fallback: assume v7x
    return int(min(cap - (8 << 20), 100 << 20))


def _sublane(dtype):
    return 16 if jnp.dtype(dtype) == jnp.bfloat16 else 8


def _round_up(x, m):
    return -(-x // m) * m


def _pick_tm(n_rows, x_dtype, per_row_bytes, fixed_bytes, limit, target):
    """Largest row tile <= target that is a sublane multiple, no bigger than the
    (rounded-up) row count, and fits the VMEM budget."""
    sub = _sublane(x_dtype)
    tm = max(sub, min(target, _round_up(n_rows, sub)))
    tm = (tm // sub) * sub
    while tm > sub and tm * per_row_bytes + fixed_bytes > limit:
        tm = max(sub, ((tm // 2) // sub) * sub)
    return tm


# ---------------------- fused LayerNorm + Linear kernels --------------------- #
def _prenorm_linear_kernel(x_ref, w_ref, b_ref, o_ref, *, eps):
    """out = LayerNorm(x) @ W + b, with the LN affine pre-folded into (W, b)."""
    x = x_ref[...].astype(jnp.float32)                       # (TM, D)
    inv_d = 1.0 / x.shape[-1]
    # One-pass moments: the two cross-lane reductions are independent.
    mean = jnp.sum(x, axis=-1, keepdims=True) * inv_d
    ex2 = jnp.sum(x * x, axis=-1, keepdims=True) * inv_d
    inv = jax.lax.rsqrt(ex2 - mean * mean + eps)
    y = ((x - mean) * inv).astype(w_ref.dtype)               # bf16 into the MXU
    acc = jnp.dot(y, w_ref[...], preferred_element_type=jnp.float32)
    o_ref[...] = (acc + b_ref[...]).astype(o_ref.dtype)


def _prenorm_linear_dout_kernel(x_ref, w_ref, b_ref, o_ref, y_ref, *, eps):
    """Dout-tiled variant: LN once per row tile (j == 0) into VMEM scratch."""
    @pl.when(pl.program_id(1) == 0)
    def _():
        x = x_ref[...].astype(jnp.float32)
        inv_d = 1.0 / x.shape[-1]
        mean = jnp.sum(x, axis=-1, keepdims=True) * inv_d
        ex2 = jnp.sum(x * x, axis=-1, keepdims=True) * inv_d
        inv = jax.lax.rsqrt(ex2 - mean * mean + eps)
        y_ref[...] = ((x - mean) * inv).astype(y_ref.dtype)

    acc = jnp.dot(y_ref[...], w_ref[...], preferred_element_type=jnp.float32)
    o_ref[...] = (acc + b_ref[...]).astype(o_ref.dtype)


def prenorm_linear(x2d, gamma, beta, w, b, *, eps=1e-5, tm=None, tn=None,
                   mxu_dtype=jnp.bfloat16):
    """out = LayerNorm(x2d; gamma, beta, eps) @ w + b, fused in one pallas_call."""
    r, d = x2d.shape
    dout = w.shape[1]
    limit = _vmem_limit_bytes()

    # Fold LN affine into the matmul (host-side algebra):
    #   (xhat*g + be) @ W + b = xhat @ (g[:,None]*W) + (be @ W + b)
    w32 = w.astype(jnp.float32)
    w_eff = (gamma.astype(jnp.float32)[:, None] * w32).astype(mxu_dtype)
    b_eff = (beta.astype(jnp.float32) @ w32 + b.astype(jnp.float32)).reshape(1, dout)

    x_isz = jnp.dtype(x2d.dtype).itemsize
    o_isz = x_isz
    w_isz = jnp.dtype(mxu_dtype).itemsize
    w_bytes = d * dout * w_isz

    use_dout_tiling = (tn is not None) or (w_bytes > limit // 4)

    if not use_dout_tiling:
        # Resident-weight path: 1-D row grid, W single-buffered in VMEM.
        per_row = 2 * d * x_isz + 2 * dout * o_isz
        if tm is None:
            tm = _pick_tm(r, x2d.dtype, per_row, w_bytes + (2 << 20), limit, 512)
        grid = (pl.cdiv(r, tm),)
        return pl.pallas_call(
            functools.partial(_prenorm_linear_kernel, eps=eps),
            out_shape=jax.ShapeDtypeStruct((r, dout), x2d.dtype),
            grid_spec=pltpu.PrefetchScalarGridSpec(
                num_scalar_prefetch=0,
                grid=grid,
                in_specs=[
                    pl.BlockSpec((tm, d), lambda i: (i, 0)),       # x tile
                    pl.BlockSpec((d, dout), lambda i: (0, 0),      # weight (resident)
                                 pipeline_mode=pl.Buffered(buffer_count=1)),
                    pl.BlockSpec((1, dout), lambda i: (0, 0),      # bias (resident)
                                 pipeline_mode=pl.Buffered(buffer_count=1)),
                ],
                out_specs=pl.BlockSpec((tm, dout), lambda i: (i, 0)),
            ),
            compiler_params=pltpu.CompilerParams(
                dimension_semantics=("parallel",),
                vmem_limit_bytes=limit,
            ),
        )(x2d, w_eff, b_eff)

    # Dout-tiled path: 2-D grid (row tiles x output-column tiles).
    if tn is None:
        tn = min(512, _round_up(dout, 128))
    if tm is None:
        per_row = 2 * d * x_isz + 2 * tn * o_isz + d * w_isz    # + scratch row
        fixed = 2 * d * tn * w_isz + (2 << 20)
        tm = _pick_tm(r, x2d.dtype, per_row, fixed, limit, 512)
    grid = (pl.cdiv(r, tm), pl.cdiv(dout, tn))
    return pl.pallas_call(
        functools.partial(_prenorm_linear_dout_kernel, eps=eps),
        out_shape=jax.ShapeDtypeStruct((r, dout), x2d.dtype),
        grid_spec=pltpu.PrefetchScalarGridSpec(
            num_scalar_prefetch=0,
            grid=grid,
            in_specs=[
                pl.BlockSpec((tm, d), lambda i, j: (i, 0)),
                pl.BlockSpec((d, tn), lambda i, j: (0, j)),
                pl.BlockSpec((1, tn), lambda i, j: (0, j)),
            ],
            out_specs=pl.BlockSpec((tm, tn), lambda i, j: (i, j)),
            scratch_shapes=[pltpu.VMEM((tm, d), mxu_dtype)],
        ),
        compiler_params=pltpu.CompilerParams(
            # j must stay the inner sequential axis so the LN scratch written at
            # j == 0 is valid for j > 0 on the same core.
            dimension_semantics=("parallel", "arbitrary"),
            vmem_limit_bytes=limit,
        ),
    )(x2d, w_eff, b_eff)


# ---------------------- standalone LayerNorm kernel (generic fn) ------------- #
def _layernorm_kernel(x_ref, g_ref, b_ref, o_ref, *, eps):
    x = x_ref[...].astype(jnp.float32)
    inv_d = 1.0 / x.shape[-1]
    mean = jnp.sum(x, axis=-1, keepdims=True) * inv_d
    ex2 = jnp.sum(x * x, axis=-1, keepdims=True) * inv_d
    inv = jax.lax.rsqrt(ex2 - mean * mean + eps)
    y = (x - mean) * inv * g_ref[...].astype(jnp.float32) + b_ref[...].astype(jnp.float32)
    o_ref[...] = y.astype(o_ref.dtype)


def layernorm(x2d, gamma, beta, *, eps=1e-5, tm=None):
    r, d = x2d.shape
    limit = _vmem_limit_bytes()
    x_isz = jnp.dtype(x2d.dtype).itemsize
    if tm is None:
        # Pure LN is strictly HBM-bound and VMEM-light: go big (1024 rows).
        tm = _pick_tm(r, x2d.dtype, 4 * d * x_isz, (1 << 20), limit, 1024)
    grid = (pl.cdiv(r, tm),)
    return pl.pallas_call(
        functools.partial(_layernorm_kernel, eps=eps),
        out_shape=jax.ShapeDtypeStruct((r, d), x2d.dtype),
        grid_spec=pltpu.PrefetchScalarGridSpec(
            num_scalar_prefetch=0,
            grid=grid,
            in_specs=[
                pl.BlockSpec((tm, d), lambda i: (i, 0)),
                pl.BlockSpec((1, d), lambda i: (0, 0),
                             pipeline_mode=pl.Buffered(buffer_count=1)),
                pl.BlockSpec((1, d), lambda i: (0, 0),
                             pipeline_mode=pl.Buffered(buffer_count=1)),
            ],
            out_specs=pl.BlockSpec((tm, d), lambda i: (i, 0)),
        ),
        compiler_params=pltpu.CompilerParams(
            dimension_semantics=("parallel",),
            vmem_limit_bytes=limit,
        ),
    )(x2d, gamma.reshape(1, d), beta.reshape(1, d))


# ---------------------- plain Linear kernel (no LayerNorm) ------------------- #
def _linear_kernel(x_ref, w_ref, b_ref, o_ref):
    x = x_ref[...].astype(w_ref.dtype)
    acc = jnp.dot(x, w_ref[...], preferred_element_type=jnp.float32)
    o_ref[...] = (acc + b_ref[...]).astype(o_ref.dtype)


def linear(x2d, w, b, *, tm=None, mxu_dtype=jnp.bfloat16):
    r, d = x2d.shape
    dout = w.shape[1]
    limit = _vmem_limit_bytes()
    w_c = w.astype(mxu_dtype)
    b_c = b.astype(jnp.float32).reshape(1, dout)
    x_isz = jnp.dtype(x2d.dtype).itemsize
    w_bytes = d * dout * jnp.dtype(mxu_dtype).itemsize
    if tm is None:
        tm = _pick_tm(r, x2d.dtype, 2 * d * x_isz + 2 * dout * x_isz,
                      w_bytes + (2 << 20), limit, 512)
    grid = (pl.cdiv(r, tm),)
    return pl.pallas_call(
        _linear_kernel,
        out_shape=jax.ShapeDtypeStruct((r, dout), x2d.dtype),
        grid_spec=pltpu.PrefetchScalarGridSpec(
            num_scalar_prefetch=0,
            grid=grid,
            in_specs=[
                pl.BlockSpec((tm, d), lambda i: (i, 0)),
                pl.BlockSpec((d, dout), lambda i: (0, 0),
                             pipeline_mode=pl.Buffered(buffer_count=1)),
                pl.BlockSpec((1, dout), lambda i: (0, 0),
                             pipeline_mode=pl.Buffered(buffer_count=1)),
            ],
            out_specs=pl.BlockSpec((tm, dout), lambda i: (i, 0)),
        ),
        compiler_params=pltpu.CompilerParams(
            dimension_semantics=("parallel",),
            vmem_limit_bytes=limit,
        ),
    )(x2d, w_c, b_c)


# ----------------------------------- modules --------------------------------- #
class PallasLinear:
    """fn = Linear(dim, dim_out) with nn.Linear-style init (plain x @ W + b)."""

    def __init__(self, key, dim, dim_out=None):
        dim_out = dim if dim_out is None else dim_out
        kw, kb = jax.random.split(key)
        bound = 1.0 / float(dim) ** 0.5
        self.w = jax.random.uniform(kw, (dim, dim_out), jnp.float32, -bound, bound)
        self.b = jax.random.uniform(kb, (dim_out,), jnp.float32, -bound, bound)

    def __call__(self, x):
        lead = x.shape[:-1]
        x2d = x.reshape(-1, x.shape[-1])
        out = linear(x2d, self.w, self.b)
        return out.reshape(*lead, self.w.shape[1])


class PreNorm:
    """x -> fn(LayerNorm(x)).  LN + Linear fused in one Pallas kernel when fn is
    a PallasLinear; generic fn falls back to the standalone LN kernel."""

    def __init__(self, dim, fn, *, eps=1e-5):
        self.dim = dim
        self.fn = fn
        self.eps = eps
        # nn.LayerNorm default init: weight = 1, bias = 0 (deterministic).
        self.gamma = jnp.ones((dim,), jnp.float32)
        self.beta = jnp.zeros((dim,), jnp.float32)

    def __call__(self, x, **kwargs):
        lead = x.shape[:-1]
        d = x.shape[-1]
        x2d = x.reshape(-1, d)
        if isinstance(self.fn, PallasLinear) and not kwargs:
            y2d = prenorm_linear(x2d, self.gamma, self.beta,
                                 self.fn.w, self.fn.b, eps=self.eps)
            return y2d.reshape(*lead, self.fn.w.shape[1])
        y2d = layernorm(x2d, self.gamma, self.beta, eps=self.eps)
        return self.fn(y2d.reshape(*lead, d), **kwargs)


# -------------------------------- reference (JAX) ----------------------------- #
def _ref_layernorm(x, gamma, beta, eps=1e-5):
    mean = jnp.mean(x, axis=-1, keepdims=True)
    var = jnp.mean((x - mean) ** 2, axis=-1, keepdims=True)
    return (x - mean) / jnp.sqrt(var + eps) * gamma + beta


def _ref_prenorm(x, gamma, beta, w, b, eps=1e-5):
    return _ref_layernorm(x, gamma, beta, eps) @ w + b


if __name__ == "__main__":
    key = jax.random.PRNGKey(0)
    kx, kf, kg = jax.random.split(key, 3)

    # 1. PreNorm(Linear) fused path, small ViT-ish shapes.
    B, N, D = 2, 8, 32
    x = jax.random.normal(kx, (B, N, D), jnp.float32)
    fn = PallasLinear(kf, D)
    prenorm = PreNorm(D, fn)
    out = jax.block_until_ready(prenorm(x))
    ref = _ref_prenorm(x, prenorm.gamma, prenorm.beta, fn.w, fn.b)
    assert out.shape == (B, N, D), out.shape
    # bf16 MXU operands -> looser tolerance than pure-f32.
    assert jnp.allclose(out, ref, atol=2e-2, rtol=2e-2), \
        float(jnp.max(jnp.abs(out - ref)))

    # 2. Ragged row count (B*N not a tile multiple): Pallas masks the partial
    #    last block; no host-side pad/slice round-trips.
    B2, N2 = 3, 5
    x2 = jax.random.normal(kx, (B2, N2, D), jnp.float32)
    out2 = jax.block_until_ready(prenorm(x2))
    ref2 = _ref_prenorm(x2, prenorm.gamma, prenorm.beta, fn.w, fn.b)
    assert jnp.allclose(out2, ref2, atol=2e-2, rtol=2e-2), \
        float(jnp.max(jnp.abs(out2 - ref2)))

    # 3. Dout-tiled path (large-weight fallback), random LN affine to check the
    #    gamma/beta -> (W, b) fold.
    R3, D3, DO3 = 48, 256, 256
    k1, k2, k3, k4, k5 = jax.random.split(kg, 5)
    x3 = jax.random.normal(k1, (R3, D3), jnp.float32)
    g3 = 1.0 + 0.1 * jax.random.normal(k2, (D3,), jnp.float32)
    be3 = 0.1 * jax.random.normal(k3, (D3,), jnp.float32)
    w3 = jax.random.normal(k4, (D3, DO3), jnp.float32) / (D3 ** 0.5)
    b3 = 0.1 * jax.random.normal(k5, (DO3,), jnp.float32)
    out3 = jax.block_until_ready(prenorm_linear(x3, g3, be3, w3, b3, tn=128))
    ref3 = _ref_prenorm(x3, g3, be3, w3, b3)
    assert jnp.allclose(out3, ref3, atol=5e-2, rtol=5e-2), \
        float(jnp.max(jnp.abs(out3 - ref3)))

    # 4. Generic fn path: standalone LN kernel, then an arbitrary fn.
    prenorm_gen = PreNorm(D, lambda y: y * 2.0)
    out4 = jax.block_until_ready(prenorm_gen(x))
    ref4 = _ref_layernorm(x, prenorm_gen.gamma, prenorm_gen.beta) * 2.0
    assert jnp.allclose(out4, ref4, atol=1e-4, rtol=1e-4), \
        float(jnp.max(jnp.abs(out4 - ref4)))

    # 5. Standalone PallasLinear (plain x @ W + b, no LayerNorm).
    out5 = jax.block_until_ready(fn(x))
    ref5 = x @ fn.w + fn.b
    assert jnp.allclose(out5, ref5, atol=2e-2, rtol=2e-2), \
        float(jnp.max(jnp.abs(out5 - ref5)))

    print("KERNEL_OK")
</pallas_src>

<mosaic_0001>
module attributes {stable_mosaic.version = 11 : i64} {
  func.func @_prenorm_linear_kernel(%arg0: i32, %arg1: memref<16x32xf32, #tpu.memory_space<vmem>>, %arg2: memref<32x32xbf16, #tpu.memory_space<vmem>>, %arg3: memref<1x32xf32, #tpu.memory_space<vmem>>, %arg4: memref<16x32xf32, #tpu.memory_space<vmem>>) attributes {dimension_semantics = [#tpu.dimension_semantics<parallel>], iteration_bounds = array<i64: 1>, scalar_prefetch = 0 : i64, scratch_operands = 0 : i64, tpu.core_type = #tpu.core_type<tc>, window_params = [{transform_indices = @transform_0, window_bounds = array<i64: 16, 32>}, {pipeline_mode = #tpu.pipeline_mode<synchronous>, transform_indices = @transform_1, window_bounds = array<i64: 32, 32>}, {pipeline_mode = #tpu.pipeline_mode<synchronous>, transform_indices = @transform_2, window_bounds = array<i64: 1, 32>}, {transform_indices = @transform_3, window_bounds = array<i64: 16, 32>}]} {
    %c0 = arith.constant 0 : index
    %c0_0 = arith.constant 0 : index
    %0 = vector.load %arg1[%c0, %c0_0] : memref<16x32xf32, #tpu.memory_space<vmem>>, vector<16x32xf32>
    %cst = arith.constant dense<0.000000e+00> : vector<16xf32>
    %1 = vector.multi_reduction <add>, %0, %cst [1] : vector<16x32xf32> to vector<16xf32>
    %2 = vector.shape_cast %1 : vector<16xf32> to vector<16x1xf32>
    %cst_1 = arith.constant 3.125000e-02 : f32
    %3 = vector.broadcast %cst_1 : f32 to vector<16x1xf32>
    %4 = arith.mulf %2, %3 : vector<16x1xf32>
    %5 = arith.mulf %0, %0 : vector<16x32xf32>
    %cst_2 = arith.constant dense<0.000000e+00> : vector<16xf32>
    %6 = vector.multi_reduction <add>, %5, %cst_2 [1] : vector<16x32xf32> to vector<16xf32>
    %7 = vector.shape_cast %6 : vector<16xf32> to vector<16x1xf32>
    %cst_3 = arith.constant 3.125000e-02 : f32
    %8 = vector.broadcast %cst_3 : f32 to vector<16x1xf32>
    %9 = arith.mulf %7, %8 : vector<16x1xf32>
    %10 = arith.mulf %4, %4 : vector<16x1xf32>
    %11 = arith.subf %9, %10 : vector<16x1xf32>
    %cst_4 = arith.constant 9.99999974E-6 : f32
    %12 = vector.broadcast %cst_4 : f32 to vector<16x1xf32>
    %13 = arith.addf %11, %12 : vector<16x1xf32>
    %14 = math.rsqrt %13 : vector<16x1xf32>
    %15 = vector.broadcast %4 : vector<16x1xf32> to vector<16x32xf32>
    %16 = arith.subf %0, %15 : vector<16x32xf32>
    %17 = vector.broadcast %14 : vector<16x1xf32> to vector<16x32xf32>
    %18 = arith.mulf %16, %17 : vector<16x32xf32>
    %19 = arith.truncf %18 : vector<16x32xf32> to vector<16x32xbf16>
    %c0_5 = arith.constant 0 : index
    %c0_6 = arith.constant 0 : index
    %20 = vector.load %arg2[%c0_5, %c0_6] : memref<32x32xbf16, #tpu.memory_space<vmem>>, vector<32x32xbf16>
    %cst_7 = arith.constant dense<0.000000e+00> : vector<16x32xf32>
    %21 = tpu.matmul %19, %20, %cst_7 {dimension_numbers = #tpu.dot_dimension_numbers<[1], [0], [0], [1], [0, 0, 1, 1], [], []>} : vector<16x32xbf16>, vector<32x32xbf16>, vector<16x32xf32> -> vector<16x32xf32>
    %c0_8 = arith.constant 0 : index
    %c0_9 = arith.constant 0 : index
    %22 = vector.load %arg3[%c0_8, %c0_9] : memref<1x32xf32, #tpu.memory_space<vmem>>, vector<1x32xf32>
    %23 = vector.broadcast %22 : vector<1x32xf32> to vector<16x32xf32>
    %24 = arith.addf %21, %23 : vector<16x32xf32>
    %c0_10 = arith.constant 0 : index
    %c0_11 = arith.constant 0 : index
    %25 = vector.load %arg4[%c0_10, %c0_11] : memref<16x32xf32, #tpu.memory_space<vmem>>, vector<16x32xf32>
    tpu.vector_store %arg4[%c0_10, %c0_11], %24 {strides = array<i32>} : memref<16x32xf32, #tpu.memory_space<vmem>>, vector<16x32xf32>,
    return
  }
  func.func @transform_0(%arg0: i32) -> (i32, i32) {
    %c0_i32 = arith.constant 0 : i32
    %c0_i32_0 = arith.constant 0 : i32
    return %arg0, %c0_i32 : i32, i32
  }
  func.func @transform_1(%arg0: i32) -> (i32, i32) {
    %c0_i32 = arith.constant 0 : i32
    %c0_i32_0 = arith.constant 0 : i32
    %c0_i32_1 = arith.constant 0 : i32
    return %c0_i32, %c0_i32_0 : i32, i32
  }
  func.func @transform_2(%arg0: i32) -> (i32, i32) {
    %c0_i32 = arith.constant 0 : i32
    %c0_i32_0 = arith.constant 0 : i32
    %c0_i32_1 = arith.constant 0 : i32
    return %c0_i32, %c0_i32_0 : i32, i32
  }
  func.func @transform_3(%arg0: i32) -> (i32, i32) {
    %c0_i32 = arith.constant 0 : i32
    %c0_i32_0 = arith.constant 0 : i32
    return %arg0, %c0_i32 : i32, i32
  }
}

</mosaic_0001>

<llo_original>
// kernel: tpu_custom_call.1
$region0: #{tpu_custom_call.1}
  #allocation0 [shape = 'u32[]', space=smem, size = 0x4, offset = 0x4, fixed_abs, tag = 'smem constant byte address 0x4 - core index']
  #allocation1 [shape = 'u32[144,128]{1,0:T(1,128)}', space=vmem, size = 0x12000, scoped, tag = 'internal scratch']
  %s0 = inlined_call_operand.hbm [shape: f32[16,32], index: 0, kind: input, shape index: {}]
  %s1 = inlined_call_operand.hbm [shape: bf16[32,32], index: 1, kind: input, shape index: {}]
  %s2 = inlined_call_operand.vmem [shape: f32[1,32], index: 2, kind: input, shape index: {}]
  %s3 = inlined_call_operand.hbm [shape: f32[16,32], index: 3, kind: output, shape index: {}]
  %s4 = sld [smem:[#allocation0]]
  $region30: #{tpu_custom_call.1} parent=0
    _
  %s6 = ssub.s32 1, %s4
  %s7 = scalar_select 0, %s6, %s4
  $region1: #{tpu_custom_call.1} parent=0
    #allocation2 [shape = 'u8[8192]{0}', space=vmem, size = 0x2000, scoped, tag = 'input window, operand 0, single buffered']
    #allocation3 [shape = 's32[1]{0}', space=sflag, size = 0x4, scoped, tag = 'scoped memory for tpu_custom_call.1']
    #allocation4 [shape = 's32[1]{0}', space=sflag, size = 0x4, scoped, tag = 'scoped memory for tpu_custom_call.1']
    #allocation5 [shape = 'u8[8192]{0}', space=vmem, size = 0x2000, scoped, tag = 'input window, operand 1, single buffered']
    #allocation6 [shape = 's32[1]{0}', space=sflag, size = 0x4, scoped, tag = 'scoped memory for tpu_custom_call.1']
    #allocation7 [shape = 'u8[8192]{0}', space=vmem, size = 0x2000, scoped, tag = 'output window, operand 0, single buffered']
    %8 = vsyncpa [#allocation3], 0
    %9 = vsyncpa [#allocation6], 0
    %10 = vsyncpa [#allocation4], 0
    // Predicated region
    $region2: #{tpu_custom_call.1} parent=1 // pred_check
      _
    $region3: #{tpu_custom_call.1} parent=1 // pred_check_branch
      %12 = sbr.rel (0) target = $region5
    $region4: #{tpu_custom_call.1} parent=1 // pred_region
      %s14 = ssub.s32 256, 256
      %15 = vsyncadd [#allocation3], %s14
      %s16 = sshll.u32 [#allocation2], 4
      %s17 = int_to_ptr.vmem [resolvable:$true] %s16
      %22 = dma.hbm_to_vmem [thread:$0]  %s0, 256, %s17, [#allocation3], 128, 128, 8
    $region5: #{tpu_custom_call.1} parent=1 // pred_fallthru
      _
    // Predicated region
    $region6: #{tpu_custom_call.1} parent=1 // pred_check
      _
    $region7: #{tpu_custom_call.1} parent=1 // pred_check_branch
      %24 = sbr.rel (0) target = $region9
    $region8: #{tpu_custom_call.1} parent=1 // pred_region
      %s26 = ssub.s32 256, 256
      %27 = vsyncadd [#allocation6], %s26
      %s28 = sshll.u32 [#allocation5], 4
      %s29 = int_to_ptr.vmem [resolvable:$true] %s28
      %34 = dma.hbm_to_vmem [thread:$0]  %s1, 256, %s29, [#allocation6], 64, 64, 4
    $region9: #{tpu_custom_call.1} parent=1 // pred_fallthru
      _
    // Predicated region
    $region10: #{tpu_custom_call.1} parent=1 // pred_check
      _
    $region11: #{tpu_custom_call.1} parent=1 // pred_check_branch
      %36 = sbr.rel (0) target = $region13
    $region12: #{tpu_custom_call.1} parent=1 // pred_region
      _
    $region13: #{tpu_custom_call.1} parent=1 // pred_fallthru
      _
    // Predicated region
    $region14: #{tpu_custom_call.1} parent=1 // pred_check
      _
    $region15: #{tpu_custom_call.1} parent=1 // pred_check_branch
      %38 = sbr.rel (0) target = $region17
    $region16: #{tpu_custom_call.1} parent=1 // pred_region
      %39 = dma.done [#allocation3], 256
    $region17: #{tpu_custom_call.1} parent=1 // pred_fallthru
      _
    // Predicated region
    $region18: #{tpu_custom_call.1} parent=1 // pred_check
      _
    $region19: #{tpu_custom_call.1} parent=1 // pred_check_branch
      %41 = sbr.rel (0) target = $region21
    $region20: #{tpu_custom_call.1} parent=1 // pred_region
      %42 = dma.done [#allocation6], 256
    $region21: #{tpu_custom_call.1} parent=1 // pred_fallthru
      _
    %v44 = vld [vmem:[#allocation2] sm:$0xff]
    %v45 = vld [vmem:[#allocation2 + $0x8] sm:$0xff]
    %vm46 = vcmask 261120
    %v47 = vsel %vm46, %v44, 0.0
    %48 = vadd.xlane.f32.xlu0 %v47
    %v49 = vpop.xlane.xlu0 %48
    %v50 = vsel %vm46, %v45, 0.0
    %51 = vadd.xlane.f32.xlu0 %v50
    %v52 = vpop.xlane.xlu0 %51
    %v53 = vmul.f32 %v49, 0.03125
    %v54 = vmul.f32 %v52, 0.03125
    %v55 = vmul.f32 %v44, %v44
    %v56 = vmul.f32 %v45, %v45
    %v57 = vsel %vm46, %v55, 0.0
    %58 = vadd.xlane.f32.xlu0 %v57
    %v59 = vpop.xlane.xlu0 %58
    %v60 = vsel %vm46, %v56, 0.0
    %61 = vadd.xlane.f32.xlu0 %v60
    %v62 = vpop.xlane.xlu0 %61
    %v63 = vmul.f32 %v59, 0.03125
    %v64 = vmul.f32 %v62, 0.03125
    %v65 = vmul.f32 %v53, %v53
    %v66 = vmul.f32 %v54, %v54
    %v67 = vsub.f32 %v63, %v65
    %v68 = vsub.f32 %v64, %v66
    %v69 = vadd.f32 %v67, 1e-05
    %v70 = vadd.f32 %v68, 1e-05
    %v71 = vrsqrt.pop %v69
    %v72 = vrsqrt.pop %v70
    %v73 = vsub.f32 %v44, %v53
    %v74 = vsub.f32 %v45, %v54
    %v75 = vmul.f32 %v73, %v71
    %v76 = vmul.f32 %v74, %v72
    %v77 = vpack.c.bf16 %v76, %v75
    %v78 = vld [vmem:[#allocation5] sm:$0xf]
    %v79 = vld [vmem:[#allocation5 + $0x4] sm:$0xf]
    %v80 = vld [vmem:[#allocation5 + $0x8] sm:$0xf]
    %v81 = vld [vmem:[#allocation5 + $0xc] sm:$0xf]
    %v82 = vld [vmem:[%s2] sm:$0x1]
    %v84 = vlaneseq
    %v85 = vshrl.u32 %v84, 7
    %v86 = vsub.s32 0, %v85
    %v87 = vrot.slane %v82, %v86
    %v93 = vunpack.c.l.b16 %v78
    %v94 = vunpack.c.l.b16 %v79
    %v95 = vunpack.c.l.b16 %v80
    %v96 = vunpack.c.l.b16 %v81
    %v97 = vpack.c.b16 %v94, %v93
    %v98 = vpack.c.b16 %v96, %v95
    %v102 = vsel %vm46, %v77, 0
    %104 = vmatprep.subr.bf16.mxu0 0
    %105 = vmatpush1.bf16.msra.mxu0 %v97
    %106 = vmatprep.subr.bf16.mxu0 0
    %107 = vmatpush1.bf16.msra.mxu0 %v98
    %108 = vmatprep.subr.bf16.mxu0 0
    %109 = vmatpush1.bf16.msra.mxu0 0
    %110 = vmatprep.subr.bf16.mxu0 0
    %111 = vmatpush1.bf16.msra.mxu0 0
    %112 = vmatprep.subr.bf16.mxu0 0
    %113 = vmatpush1.bf16.msra.mxu0 0
    %114 = vmatprep.subr.bf16.mxu0 0
    %115 = vmatpush1.bf16.msra.mxu0 0
    %116 = vmatprep.subr.bf16.mxu0 0
    %117 = vmatpush1.bf16.msra.mxu0 0
    %118 = vmatprep.subr.bf16.mxu0 0
    %119 = vmatpush1.bf16.msra.mxu0 0
    %120 = vmatprep.subr.bf16.mxu0 0
    %121 = vmatpush1.bf16.msra.mxu0 0
    %122 = vmatprep.subr.bf16.mxu0 0
    %123 = vmatpush1.bf16.msra.mxu0 0
    %124 = vmatprep.subr.bf16.mxu0 0
    %125 = vmatpush1.bf16.msra.mxu0 0
    %126 = vmatprep.subr.bf16.mxu0 0
    %127 = vmatpush1.bf16.msra.mxu0 0
    %128 = vmatprep.subr.bf16.mxu0 0
    %129 = vmatpush1.bf16.msra.mxu0 0
    %130 = vmatprep.subr.bf16.mxu0 0
    %131 = vmatpush1.bf16.msra.mxu0 0
    %132 = vmatprep.subr.bf16.mxu0 0
    %133 = vmatpush1.bf16.msra.mxu0 0
    %134 = vmatprep.subr.bf16.mxu0 0
    %135 = vmatpush1.bf16.msra.mxu0 0
    %136 = vmatprep.mubr.bf16.mxu0 0
    %137 = vmatmul.mubr.bf16.gmra.mrb[0].mxu0 %v102
    %v138 = vpop.f32.mrb[0].mxu0
    %v139 = vadd.f32 %v87, %v138
    %v140 = vpop.f32.mrb[0].mxu0
    %v141 = vpop.f32.mrb[0].mxu0
    %v142 = vadd.f32 %v87, %v141
    %v143 = vpop.f32.mrb[0].mxu0
    %144 = vdwg.mxu0
    %145 = vst.msk [vmem:[#allocation7] sm:$0xff] %vm46, %v139
    %146 = vst.msk [vmem:[#allocation7 + $0x8] sm:$0xff] %vm46, %v142
    // Predicated region
    $region22: #{tpu_custom_call.1} parent=1 // pred_check
      _
    $region23: #{tpu_custom_call.1} parent=1 // pred_check_branch
      %148 = sbr.rel (0) target = $region25
    $region24: #{tpu_custom_call.1} parent=1 // pred_region
      %s150 = ssub.s32 256, 256
      %151 = vsyncadd [#allocation4], %s150
      %s152 = sshll.u32 [#allocation7], 4
      %s153 = int_to_ptr.vmem [resolvable:$true] %s152
      %158 = dma.vmem_to_hbm [thread:$0]  %s153, 256, %s3, [#allocation4], 128, 128, 8
    $region25: #{tpu_custom_call.1} parent=1 // pred_fallthru
      _
    // Predicated region
    $region26: #{tpu_custom_call.1} parent=1 // pred_check
      _
    $region27: #{tpu_custom_call.1} parent=1 // pred_check_branch
      %160 = sbr.rel (0) target = $region29
    $region28: #{tpu_custom_call.1} parent=1 // pred_region
      %161 = dma.done [#allocation4], 256
    $region29: #{tpu_custom_call.1} parent=1 // pred_fallthru
      _
    %162 = vsyncpa [#allocation3], 1
    %163 = vsyncpa [#allocation6], 1
    %164 = vsyncpa [#allocation4], 1

</llo_original>
